<compile_context>
chip_gen: v7x
topology: tpu7x:2x2x1
jax: 0.10.0
libtpu: 0.0.40
codegen_flags: <defaults>
</compile_context>

<pallas_src>
import functools

import jax
import jax.numpy as jnp
from jax.experimental import pallas as pl
from jax.experimental.pallas import tpu as pltpu


def _layernorm_kernel(x_ref, a_ref, b_ref, o_ref, *, eps, features):
    x = x_ref[...].astype(jnp.float32)                          # (tr, F)

    # Two-pass, numerically stable statistics (matches torch's two-pass std).
    mean = jnp.sum(x, axis=-1, keepdims=True) / features        # (tr, 1)
    xc = x - mean                                               # (tr, F)
    # torch.std default is the UNBIASED estimator (divide by N-1).
    var = jnp.sum(xc * xc, axis=-1, keepdims=True) / (features - 1)
    std = jnp.sqrt(var)                                         # (tr, 1)

    # Full-precision per-row reciprocal on the (tr, 1) column; the per-element
    # work over the (tr, F) tile stays a single multiply.
    inv = 1.0 / (std + eps)                                     # (tr, 1)

    a = a_ref[...]                                              # (1, F), f32
    b = b_ref[...]                                              # (1, F), f32
    o_ref[...] = ((xc * inv) * a + b).astype(o_ref.dtype)


def _vmem_capacity_bytes():
    """Physical VMEM per TensorCore; falls back to the 128 MiB v5e/v6e value
    when the query is unavailable (e.g. interpret mode / no TPU attached)."""
    try:
        return int(pltpu.get_tpu_info().vmem_capacity_bytes)
    except Exception:
        return 128 << 20


def _tiling_policy(features, dtype):
    """Generation-split tile / VMEM policy.

    Returns (row_block_upper_bound, vmem_limit_bytes, sublane)."""
    itemsize = jnp.dtype(dtype).itemsize
    sublane = max(8, 32 // max(itemsize, 1))      # 8 f32, 16 bf16, 32 int8/fp8

    vmem_cap = _vmem_capacity_bytes()
    if vmem_cap <= (64 << 20):                    # v7x-class (64 MiB VMEM)
        vmem_limit = 48 << 20
        hbm_tile_target = 4 << 20                 # input bytes per block
    else:                                         # v5e / v6e (128 MiB VMEM)
        vmem_limit = 96 << 20
        hbm_tile_target = 8 << 20

    # In-kernel working set per block row:
    #   2x double-buffered input + 2x double-buffered output (in x.dtype)
    #   + ~3 live (tr, F) f32 temps (f32 cast, centered tile, fused product).
    per_row_ws = 4 * features * itemsize + 12 * features
    rb_ws = int(vmem_limit * 0.85) // max(per_row_ws, 1)
    rb_hbm = hbm_tile_target // max(features * itemsize, 1)
    rb = min(rb_ws, rb_hbm)                       # byte caps only — no row cap
    rb = max(sublane, (rb // sublane) * sublane)
    return rb, vmem_limit, sublane


def layer_norm(x, a_2, b_2, eps=1e-6, row_block=None):
    """x: (..., features). a_2, b_2: (features,)."""
    orig_shape = x.shape
    features = orig_shape[-1]
    if features < 2:
        # torch.std(ddof=1) gives 0/0 -> NaN for a single feature; reject early.
        raise ValueError("LayerNorm with unbiased std requires features >= 2.")

    rows = 1
    for d in orig_shape[:-1]:
        rows *= d

    x2 = x.reshape(rows, features)
    # Pre-cast params to f32 once here (tiny arrays) — no per-step casts in-kernel.
    a2 = a_2.astype(jnp.float32).reshape(1, features)
    b2 = b_2.astype(jnp.float32).reshape(1, features)

    rb_cap, vmem_limit, sublane = _tiling_policy(features, x.dtype)
    if row_block is None:
        row_block = rb_cap
    # Guarantee a grid of >= 2 steps whenever more than one sublane-tile of
    # rows exists (feeds both v7x TensorCores); otherwise keep byte-sized tiles.
    half_rows = (((rows + 1) // 2) + sublane - 1) // sublane * sublane
    row_block = max(min(row_block, half_rows), sublane)

    # Ragged last block is handled by Pallas masking — no padding copies.
    grid = (pl.cdiv(rows, row_block),)

    kernel = functools.partial(_layernorm_kernel, eps=eps, features=features)

    out = pl.pallas_call(
        kernel,
        out_shape=jax.ShapeDtypeStruct((rows, features), x.dtype),
        grid_spec=pltpu.PrefetchScalarGridSpec(
            num_scalar_prefetch=0,
            grid=grid,
            in_specs=[
                pl.BlockSpec((row_block, features), lambda i: (i, 0)),
                pl.BlockSpec((1, features), lambda i: (0, 0)),
                pl.BlockSpec((1, features), lambda i: (0, 0)),
            ],
            out_specs=pl.BlockSpec((row_block, features), lambda i: (i, 0)),
        ),
        compiler_params=pltpu.CompilerParams(
            dimension_semantics=("parallel",),
            vmem_limit_bytes=vmem_limit,
        ),
    )(x2, a2, b2)

    return out.reshape(orig_shape)


if __name__ == "__main__":
    key = jax.random.PRNGKey(0)
    k_main, k_ragged, k_a, k_b = jax.random.split(key, 4)

    def ref_ln(x, a, b, eps):
        # Pure-JAX reference with torch semantics (unbiased std, eps added to std).
        mean = jnp.mean(x, axis=-1, keepdims=True)
        std = jnp.sqrt(
            jnp.sum((x - mean) ** 2, axis=-1, keepdims=True) / (x.shape[-1] - 1)
        )
        return a * (x - mean) / (std + eps) + b

    # Main check: shapes implied by the module (batch, seq, hidden).
    batch, seq, hidden = 2, 8, 32
    x = jax.random.normal(k_main, (batch, seq, hidden), dtype=jnp.float32)
    a_2 = jnp.ones((hidden,), dtype=jnp.float32)   # nn.Parameter(torch.ones(features))
    b_2 = jnp.zeros((hidden,), dtype=jnp.float32)  # nn.Parameter(torch.zeros(features))
    eps = 1e-6

    out = layer_norm(x, a_2, b_2, eps=eps)
    jax.block_until_ready(out)
    ref = ref_ln(x, a_2, b_2, eps)
    assert jnp.allclose(out, ref, atol=1e-5, rtol=1e-5), "mismatch vs reference"

    # Ragged row count (rows % row_block != 0) + non-trivial gamma/beta:
    # exercises the masked last block and the scale/shift path.
    b2_, s2_, h2_ = 3, 5, 48
    x_r = jax.random.normal(k_ragged, (b2_, s2_, h2_), dtype=jnp.float32)
    a_r = 1.0 + 0.1 * jax.random.normal(k_a, (h2_,), dtype=jnp.float32)
    b_r = 0.1 * jax.random.normal(k_b, (h2_,), dtype=jnp.float32)
    out_r = layer_norm(x_r, a_r, b_r, eps=eps)
    jax.block_until_ready(out_r)
    ref_r = ref_ln(x_r, a_r, b_r, eps)
    assert jnp.allclose(out_r, ref_r, atol=1e-5, rtol=1e-5), "ragged-block mismatch"

    print("KERNEL_OK")
</pallas_src>

<mosaic_0001>
module attributes {stable_mosaic.version = 11 : i64} {
  func.func @_layernorm_kernel(%arg0: i32, %arg1: memref<8x32xf32, #tpu.memory_space<vmem>>, %arg2: memref<1x32xf32, #tpu.memory_space<vmem>>, %arg3: memref<1x32xf32, #tpu.memory_space<vmem>>, %arg4: memref<8x32xf32, #tpu.memory_space<vmem>>) attributes {dimension_semantics = [#tpu.dimension_semantics<parallel>], iteration_bounds = array<i64: 2>, scalar_prefetch = 0 : i64, scratch_operands = 0 : i64, tpu.core_type = #tpu.core_type<tc>, window_params = [{transform_indices = @transform_0, window_bounds = array<i64: 8, 32>}, {pipeline_mode = #tpu.pipeline_mode<synchronous>, transform_indices = @transform_1, window_bounds = array<i64: 1, 32>}, {pipeline_mode = #tpu.pipeline_mode<synchronous>, transform_indices = @transform_2, window_bounds = array<i64: 1, 32>}, {transform_indices = @transform_3, window_bounds = array<i64: 8, 32>}]} {
    %c0 = arith.constant 0 : index
    %c0_0 = arith.constant 0 : index
    %0 = vector.load %arg1[%c0, %c0_0] : memref<8x32xf32, #tpu.memory_space<vmem>>, vector<8x32xf32>
    %cst = arith.constant dense<0.000000e+00> : vector<8xf32>
    %1 = vector.multi_reduction <add>, %0, %cst [1] : vector<8x32xf32> to vector<8xf32>
    %2 = vector.shape_cast %1 : vector<8xf32> to vector<8x1xf32>
    %cst_1 = arith.constant 3.200000e+01 : f32
    %3 = vector.broadcast %cst_1 : f32 to vector<8x1xf32>
    %4 = arith.divf %2, %3 : vector<8x1xf32>
    %5 = vector.broadcast %4 : vector<8x1xf32> to vector<8x32xf32>
    %6 = arith.subf %0, %5 : vector<8x32xf32>
    %7 = arith.mulf %6, %6 : vector<8x32xf32>
    %cst_2 = arith.constant dense<0.000000e+00> : vector<8xf32>
    %8 = vector.multi_reduction <add>, %7, %cst_2 [1] : vector<8x32xf32> to vector<8xf32>
    %9 = vector.shape_cast %8 : vector<8xf32> to vector<8x1xf32>
    %cst_3 = arith.constant 3.100000e+01 : f32
    %10 = vector.broadcast %cst_3 : f32 to vector<8x1xf32>
    %11 = arith.divf %9, %10 : vector<8x1xf32>
    %12 = math.sqrt %11 : vector<8x1xf32>
    %cst_4 = arith.constant 9.99999997E-7 : f32
    %13 = vector.broadcast %cst_4 : f32 to vector<8x1xf32>
    %14 = arith.addf %12, %13 : vector<8x1xf32>
    %cst_5 = arith.constant 1.000000e+00 : f32
    %15 = vector.broadcast %cst_5 : f32 to vector<8x1xf32>
    %16 = arith.divf %15, %14 : vector<8x1xf32>
    %c0_6 = arith.constant 0 : index
    %c0_7 = arith.constant 0 : index
    %17 = vector.load %arg2[%c0_6, %c0_7] : memref<1x32xf32, #tpu.memory_space<vmem>>, vector<1x32xf32>
    %c0_8 = arith.constant 0 : index
    %c0_9 = arith.constant 0 : index
    %18 = vector.load %arg3[%c0_8, %c0_9] : memref<1x32xf32, #tpu.memory_space<vmem>>, vector<1x32xf32>
    %19 = vector.broadcast %16 : vector<8x1xf32> to vector<8x32xf32>
    %20 = arith.mulf %6, %19 : vector<8x32xf32>
    %21 = vector.broadcast %17 : vector<1x32xf32> to vector<8x32xf32>
    %22 = arith.mulf %20, %21 : vector<8x32xf32>
    %23 = vector.broadcast %18 : vector<1x32xf32> to vector<8x32xf32>
    %24 = arith.addf %22, %23 : vector<8x32xf32>
    %c0_10 = arith.constant 0 : index
    %c0_11 = arith.constant 0 : index
    %25 = vector.load %arg4[%c0_10, %c0_11] : memref<8x32xf32, #tpu.memory_space<vmem>>, vector<8x32xf32>
    tpu.vector_store %arg4[%c0_10, %c0_11], %24 {strides = array<i32>} : memref<8x32xf32, #tpu.memory_space<vmem>>, vector<8x32xf32>,
    return
  }
  func.func @transform_0(%arg0: i32) -> (i32, i32) {
    %c0_i32 = arith.constant 0 : i32
    %c0_i32_0 = arith.constant 0 : i32
    return %arg0, %c0_i32 : i32, i32
  }
  func.func @transform_1(%arg0: i32) -> (i32, i32) {
    %c0_i32 = arith.constant 0 : i32
    %c0_i32_0 = arith.constant 0 : i32
    %c0_i32_1 = arith.constant 0 : i32
    return %c0_i32, %c0_i32_0 : i32, i32
  }
  func.func @transform_2(%arg0: i32) -> (i32, i32) {
    %c0_i32 = arith.constant 0 : i32
    %c0_i32_0 = arith.constant 0 : i32
    %c0_i32_1 = arith.constant 0 : i32
    return %c0_i32, %c0_i32_0 : i32, i32
  }
  func.func @transform_3(%arg0: i32) -> (i32, i32) {
    %c0_i32 = arith.constant 0 : i32
    %c0_i32_0 = arith.constant 0 : i32
    return %arg0, %c0_i32 : i32, i32
  }
}

</mosaic_0001>

<llo_original>
// kernel: tpu_custom_call.1
$region0: #{tpu_custom_call.1}
  #allocation0 [shape = 'u32[]', space=smem, size = 0x4, offset = 0x4, fixed_abs, tag = 'smem constant byte address 0x4 - core index']
  #allocation1 [shape = 'u32[144,128]{1,0:T(1,128)}', space=vmem, size = 0x12000, scoped, tag = 'internal scratch']
  %s0 = inlined_call_operand.hbm [shape: f32[16,32], index: 0, kind: input, shape index: {}]
  %s1 = inlined_call_operand.hbm [shape: f32[1,32], index: 1, kind: input, shape index: {}]
  %s2 = inlined_call_operand.hbm [shape: f32[1,32], index: 2, kind: input, shape index: {}]
  %s3 = inlined_call_operand.hbm [shape: f32[16,32], index: 3, kind: output, shape index: {}]
  %s4 = sld [smem:[#allocation0]]
  $region57: #{tpu_custom_call.1} parent=0
    _
  %s6 = ssub.s32 1, %s4
  %s7 = scalar_select 0, %s6, %s4
  $region1: #{tpu_custom_call.1} parent=0
    #allocation2 [shape = 'u8[8192]{0}', space=vmem, size = 0x2000, scoped, tag = 'input window, operand 0']
    #allocation3 [shape = 's32[2]{0}', space=sflag, size = 0x8, scoped, tag = 'scoped memory for tpu_custom_call.1']
    #allocation4 [shape = 's32[2]{0}', space=sflag, size = 0x8, scoped, tag = 'scoped memory for tpu_custom_call.1']
    #allocation5 [shape = 'u8[512]{0}', space=vmem, size = 0x400, scoped, tag = 'input window, operand 1, single buffered']
    #allocation6 [shape = 's32[1]{0}', space=sflag, size = 0x4, scoped, tag = 'scoped memory for tpu_custom_call.1']
    #allocation7 [shape = 'u8[512]{0}', space=vmem, size = 0x400, scoped, tag = 'input window, operand 2, single buffered']
    #allocation8 [shape = 'u8[8192]{0}', space=vmem, size = 0x2000, scoped, tag = 'output window, operand 0']
    %8 = vsyncpa [#allocation3], 0
    %s9 = scalar_lea.sflag [#allocation3], 1
    %10 = vsyncpa %s9, 0
    %11 = vsyncpa [#allocation6], 0
    %12 = vsyncpa [#allocation4], 0
    %s13 = scalar_lea.sflag [#allocation4], 1
    %14 = vsyncpa %s13, 0
    loop: start=0, step=1, limit=4
    $region2: #{tpu_custom_call.1} parent=1 // loop_pre_header
      _
    $region3: #{tpu_custom_call.1} parent=1 // loop_header
      %s16 = sphi 0, %s20
      %p17 = scmp.ge.s32.totalorder %s16, 4
      %s26 = sphi 0, %s28
      %s29 = sphi 0, %s26
      %s30 = sphi 0, %s29
      %s46 = sphi 0, %s30
      %s50 = sphi 0, %s50
      %s52 = sphi 0, %s50
      %s53 = sphi 0, %s52
      %s67 = sphi 0, %s53
      %s71 = sphi 0, %s71
      %s73 = sphi 0, %s71
      %s74 = sphi 0, %s73
      %s88 = sphi 0, %s74
      %s94 = sphi 0, %s96
      %s97 = sphi 0, %s94
      %s98 = sphi 0, %s97
      %s114 = sphi 0, %s98
    $region4: #{tpu_custom_call.1} parent=1 // loop_header_branch
      %19 = sbr.rel (%p17) target = $region8
    $region5: #{tpu_custom_call.1} parent=1 // loop_body
      %s21 = ssub.s32 %s16, 1
      %s22 = ssub.s32 %s16, 2
      %s23 = sadd.s32 %s16, 1
      %s24 = ssub.s32 %s16, %s23
      %p25 = scmp.eq.s32.totalorder %s24, 0
      %s27 = sadd.s32 %s26, 1
      %s28 = scalar_select %p25, %s26, %s27
      %p31 = pneg %p25
      %p32 = scmp.eq.s32.totalorder %s16, 1
      %p33 = por %p31, %p32
      %p34 = scmp.ne.s32.totalorder %s26, %s29
      %p35 = scmp.eq.s32.totalorder %s16, 0
      %p36 = por %p34, %p35
      %p37 = scmp.ne.s32.totalorder %s26, %s29
      %p38 = scmp.eq.s32.totalorder %s21, 1
      %p39 = por %p37, %p38
      %p40 = scmp.ne.s32.totalorder %s29, %s30
      %p41 = scmp.eq.s32.totalorder %s21, 0
      %p42 = por %p40, %p41
      %p43 = scmp.ne.s32.totalorder %s29, %s30
      %p44 = scmp.eq.s32.totalorder %s22, 1
      %p45 = por %p43, %p44
      %p47 = scmp.ne.s32.totalorder %s30, %s46
      %p48 = scmp.eq.s32.totalorder %s22, 0
      %p49 = por %p47, %p48
      %s51 = sadd.s32 %s50, 1
      %p54 = scmp.eq.s32.totalorder %s16, 1
      %p55 = scmp.ne.s32.totalorder %s50, %s52
      %p56 = scmp.eq.s32.totalorder %s16, 0
      %p57 = por %p55, %p56
      %p58 = scmp.ne.s32.totalorder %s50, %s52
      %p59 = scmp.eq.s32.totalorder %s21, 1
      %p60 = por %p58, %p59
      %p61 = scmp.ne.s32.totalorder %s52, %s53
      %p62 = scmp.eq.s32.totalorder %s21, 0
      %p63 = por %p61, %p62
      %p64 = scmp.ne.s32.totalorder %s52, %s53
      %p65 = scmp.eq.s32.totalorder %s22, 1
      %p66 = por %p64, %p65
      %p68 = scmp.ne.s32.totalorder %s53, %s67
      %p69 = scmp.eq.s32.totalorder %s22, 0
      %p70 = por %p68, %p69
      %s72 = sadd.s32 %s71, 1
      %p75 = scmp.eq.s32.totalorder %s16, 1
      %p76 = scmp.ne.s32.totalorder %s71, %s73
      %p77 = scmp.eq.s32.totalorder %s16, 0
      %p78 = por %p76, %p77
      %p79 = scmp.ne.s32.totalorder %s71, %s73
      %p80 = scmp.eq.s32.totalorder %s21, 1
      %p81 = por %p79, %p80
      %p82 = scmp.ne.s32.totalorder %s73, %s74
      %p83 = scmp.eq.s32.totalorder %s21, 0
      %p84 = por %p82, %p83
      %p85 = scmp.ne.s32.totalorder %s73, %s74
      %p86 = scmp.eq.s32.totalorder %s22, 1
      %p87 = por %p85, %p86
      %p89 = scmp.ne.s32.totalorder %s74, %s88
      %p90 = scmp.eq.s32.totalorder %s22, 0
      %p91 = por %p89, %p90
      %s92 = ssub.s32 %s16, %s23
      %p93 = scmp.eq.s32.totalorder %s92, 0
      %s95 = sadd.s32 %s94, 1
      %s96 = scalar_select %p93, %s94, %s95
      %p99 = pneg %p93
      %p100 = scmp.eq.s32.totalorder %s16, 1
      %p101 = por %p99, %p100
      %p102 = scmp.ne.s32.totalorder %s94, %s97
      %p103 = scmp.eq.s32.totalorder %s16, 0
      %p104 = por %p102, %p103
      %p105 = scmp.ne.s32.totalorder %s94, %s97
      %p106 = scmp.eq.s32.totalorder %s21, 1
      %p107 = por %p105, %p106
      %p108 = scmp.ne.s32.totalorder %s97, %s98
      %p109 = scmp.eq.s32.totalorder %s21, 0
      %p110 = por %p108, %p109
      %p111 = scmp.ne.s32.totalorder %s97, %s98
      %p112 = scmp.eq.s32.totalorder %s22, 1
      %p113 = por %p111, %p112
      %p115 = scmp.ne.s32.totalorder %s98, %s114
      %p116 = scmp.eq.s32.totalorder %s22, 0
      %p117 = por %p115, %p116
      %p118 = scmp.le.s32.totalorder 1, %s16
      %p119 = scmp.lt.s32.totalorder %s16, 3
      %p120 = pnand %p118, %p119
      %p121 = pneg %p120
      // Predicated region
      $region9: #{tpu_custom_call.1} parent=5 // pred_check
        _
      $region10: #{tpu_custom_call.1} parent=5 // pred_check_branch
        %123 = sbr.rel (%p120) target = $region12
      $region11: #{tpu_custom_call.1} parent=5 // pred_region
        %s124 = ssub.s32 %s16, 1
        // Predicated region
        $region13: #{tpu_custom_call.1} parent=11 // pred_check
          %p125 = pneg %p63
        $region14: #{tpu_custom_call.1} parent=11 // pred_check_branch
          %127 = sbr.rel (%p125) target = $region16
        $region15: #{tpu_custom_call.1} parent=11 // pred_region
          %s129 = ssub.s32 16, 16
          %130 = vsyncadd [#allocation6], %s129
          %s132 = sshll.u32 [#allocation5], 4
          %s133 = int_to_ptr.vmem [resolvable:$true] %s132
          %135 = dma.hbm_to_vmem [thread:$0]  %s1, 16, %s133, [#allocation6]
        $region16: #{tpu_custom_call.1} parent=11 // pred_fallthru
          _
        // Predicated region
        $region17: #{tpu_custom_call.1} parent=11 // pred_check
          %p136 = pneg %p84
        $region18: #{tpu_custom_call.1} parent=11 // pred_check_branch
          %138 = sbr.rel (%p136) target = $region20
        $region19: #{tpu_custom_call.1} parent=11 // pred_region
          %s140 = ssub.s32 16, 16
          %141 = vsyncadd [#allocation6], %s140
          %s143 = sshll.u32 [#allocation7], 4
          %s144 = int_to_ptr.vmem [resolvable:$true] %s143
          %146 = dma.hbm_to_vmem [thread:$0]  %s2, 16, %s144, [#allocation6]
        $region20: #{tpu_custom_call.1} parent=11 // pred_fallthru
          _
      $region12: #{tpu_custom_call.1} parent=5 // pred_fallthru
        _
      %p147 = scmp.lt.s32.totalorder %s16, 2
      // Predicated region
      $region21: #{tpu_custom_call.1} parent=5 // pred_check
        %p148 = pneg %p147
      $region22: #{tpu_custom_call.1} parent=5 // pred_check_branch
        %150 = sbr.rel (%p148) target = $region24
      $region23: #{tpu_custom_call.1} parent=5 // pred_region
        // Predicated region
        $region25: #{tpu_custom_call.1} parent=23 // pred_check
          %p151 = pneg %p36
        $region26: #{tpu_custom_call.1} parent=23 // pred_check_branch
          %153 = sbr.rel (%p151) target = $region28
        $region27: #{tpu_custom_call.1} parent=23 // pred_region
          %s154 = sand.u32 %s26, 1
          %s155 = scalar_lea.sflag [#allocation3], %s154
          %s156 = sand.u32 %s26, 1
          %s157 = smul.addr %s156, 8
          %s158 = scalar_lea.vmem [#allocation2], %s157
          %s160 = ssub.s32 128, 128
          %161 = vsyncadd %s155, %s160
          %s162 = smul.addr %s16, 128
          %s163 = scalar_lea.hbm %s0, %s162
          %s165 = sshll.u32 %s158, 4
          %s166 = int_to_ptr.vmem [resolvable:$true] %s165
          %168 = dma.hbm_to_vmem [thread:$0]  %s163, 128, %s166, %s155
        $region28: #{tpu_custom_call.1} parent=23 // pred_fallthru
          _
      $region24: #{tpu_custom_call.1} parent=5 // pred_fallthru
        _
      %p169 = scmp.le.s32.totalorder 1, %s16
      %p170 = scmp.lt.s32.totalorder %s16, 3
      %p171 = pnand %p169, %p170
      %p172 = pneg %p171
      // Predicated region
      $region29: #{tpu_custom_call.1} parent=5 // pred_check
        _
      $region30: #{tpu_custom_call.1} parent=5 // pred_check_branch
        %174 = sbr.rel (%p171) target = $region32
      $region31: #{tpu_custom_call.1} parent=5 // pred_region
        %s175 = ssub.s32 %s16, 1
        %s176 = sand.u32 %s29, 1
        %s177 = scalar_lea.sflag [#allocation3], %s176
        %s178 = sand.u32 %s29, 1
        %s179 = smul.addr %s178, 8
        %s180 = scalar_lea.vmem [#allocation2], %s179
        // Predicated region
        $region33: #{tpu_custom_call.1} parent=31 // pred_check
          %p181 = pneg %p42
        $region34: #{tpu_custom_call.1} parent=31 // pred_check_branch
          %183 = sbr.rel (%p181) target = $region36
        $region35: #{tpu_custom_call.1} parent=31 // pred_region
          %184 = dma.done %s177, 128
        $region36: #{tpu_custom_call.1} parent=31 // pred_fallthru
          _
        // Predicated region
        $region37: #{tpu_custom_call.1} parent=31 // pred_check
          %p185 = pneg %p63
        $region38: #{tpu_custom_call.1} parent=31 // pred_check_branch
          %187 = sbr.rel (%p185) target = $region40
        $region39: #{tpu_custom_call.1} parent=31 // pred_region
          %188 = dma.done [#allocation6], 16
        $region40: #{tpu_custom_call.1} parent=31 // pred_fallthru
          _
        // Predicated region
        $region41: #{tpu_custom_call.1} parent=31 // pred_check
          %p189 = pneg %p84
        $region42: #{tpu_custom_call.1} parent=31 // pred_check_branch
          %191 = sbr.rel (%p189) target = $region44
        $region43: #{tpu_custom_call.1} parent=31 // pred_region
          %192 = dma.done [#allocation6], 16
        $region44: #{tpu_custom_call.1} parent=31 // pred_fallthru
          _
        %s193 = sand.u32 %s29, 1
        %s194 = scalar_lea.sflag [#allocation3], %s193
        %s195 = sand.u32 %s29, 1
        %s196 = smul.addr %s195, 8
        %s197 = scalar_lea.vmem [#allocation2], %s196
        %p198 = pneg %p42
        %p199 = pneg %p39
        %p200 = pneg %p63
        %p201 = pneg %p60
        %p202 = pneg %p84
        %p203 = pneg %p81
        %p204 = pneg %p110
        %p205 = pneg %p107
        %s206 = sand.u32 %s97, 1
        %s207 = scalar_lea.sflag [#allocation4], %s206
        %s208 = sand.u32 %s97, 1
        %s209 = smul.addr %s208, 8
        %s210 = scalar_lea.vmem [#allocation8], %s209
        %v211 = vld [vmem:[%s180] sm:$0xff]
        %vm212 = vcmask 261120
        %v213 = vsel %vm212, %v211, 0.0
        %214 = vadd.xlane.f32.xlu0 %v213
        %v215 = vpop.xlane.xlu0 %214
        %v216 = vrcp.pop 32.0
        %v217 = vmul.f32 %v215, %v216
        %v218 = vsub.f32 %v211, %v217
        %v219 = vmul.f32 %v218, %v218
        %v220 = vsel %vm212, %v219, 0.0
        %221 = vadd.xlane.f32.xlu0 %v220
        %v222 = vpop.xlane.xlu0 %221
        %v223 = vrcp.pop 31.0
        %v224 = vmul.f32 %v222, %v223
        %v225 = vrsqrt.pop %v224
        %v226 = vmul.f32 %v224, %v225
        %vm227 = vcmp.eq.f32.partialorder %v224, inf
        %v228 = vsel %vm227, %v224, %v226
        %vm229 = vcmp.eq.f32.partialorder %v224, 0.0
        %v230 = vand.u32 %v224, 2147483648
        %v231 = vsel %vm229, %v230, %v228
        %v232 = vadd.f32 %v231, 1e-06
        %v233 = vrcp.pop %v232
        %v234 = vmul.f32 1.0, %v233
        %v235 = vld [vmem:[#allocation5] sm:$0x1]
        %v236 = vld [vmem:[#allocation7] sm:$0x1]
        %v237 = vmul.f32 %v218, %v234
        %v239 = vlaneseq
        %v240 = vshrl.u32 %v239, 7
        %v241 = vsub.s32 0, %v240
        %v242 = vrot.slane %v235, %v241
        %v244 = vmul.f32 %v237, %v242
        %v246 = vlaneseq
        %v247 = vshrl.u32 %v246, 7
        %v248 = vsub.s32 0, %v247
        %v249 = vrot.slane %v236, %v248
        %v251 = vadd.f32 %v244, %v249
        %252 = vst.msk [vmem:[%s210] sm:$0xff] %vm212, %v251
        %s253 = sand.u32 %s97, 1
        %s254 = scalar_lea.sflag [#allocation4], %s253
        %s255 = sand.u32 %s97, 1
        %s256 = smul.addr %s255, 8
        %s257 = scalar_lea.vmem [#allocation8], %s256
        // Predicated region
        $region45: #{tpu_custom_call.1} parent=31 // pred_check
          %p258 = pneg %p107
        $region46: #{tpu_custom_call.1} parent=31 // pred_check_branch
          %260 = sbr.rel (%p258) target = $region48
        $region47: #{tpu_custom_call.1} parent=31 // pred_region
          %s262 = ssub.s32 128, 128
          %263 = vsyncadd %s254, %s262
          %s264 = smul.addr %s21, 128
          %s265 = scalar_lea.hbm %s3, %s264
          %s267 = sshll.u32 %s257, 4
          %s268 = int_to_ptr.vmem [resolvable:$true] %s267
          %270 = dma.vmem_to_hbm [thread:$0]  %s268, 128, %s265, %s254
        $region48: #{tpu_custom_call.1} parent=31 // pred_fallthru
          _
      $region32: #{tpu_custom_call.1} parent=5 // pred_fallthru
        _
      %p271 = scmp.le.s32.totalorder 2, %s16
      // Predicated region
      $region49: #{tpu_custom_call.1} parent=5 // pred_check
        %p272 = pneg %p271
      $region50: #{tpu_custom_call.1} parent=5 // pred_check_branch
        %274 = sbr.rel (%p272) target = $region52
      $region51: #{tpu_custom_call.1} parent=5 // pred_region
        %s275 = ssub.s32 %s16, 2
        // Predicated region
        $region53: #{tpu_custom_call.1} parent=51 // pred_check
          %p276 = pneg %p113
        $region54: #{tpu_custom_call.1} parent=51 // pred_check_branch
          %278 = sbr.rel (%p276) target = $region56
        $region55: #{tpu_custom_call.1} parent=51 // pred_region
          %s279 = sand.u32 %s98, 1
          %s280 = scalar_lea.sflag [#allocation4], %s279
          %s281 = sand.u32 %s98, 1
          %s282 = smul.addr %s281, 8
          %s283 = scalar_lea.vmem [#allocation8], %s282
          %284 = dma.done %s280, 128
        $region56: #{tpu_custom_call.1} parent=51 // pred_fallthru
          _
      $region52: #{tpu_custom_call.1} parent=5 // pred_fallthru
        _
    $region6: #{tpu_custom_call.1} parent=1 // loop_footer
      %s20 = sadd.s32 1, %s16
    $region7: #{tpu_custom_call.1} parent=1 // loop_footer_branch
      %15 = sbr.rel target = $region3
    $region8: #{tpu_custom_call.1} parent=1 // loop_exit
      _
    %285 = vsyncpa [#allocation3], 1
    %s286 = scalar_lea.sflag [#allocation3], 1
    %287 = vsyncpa %s286, 1
    %288 = vsyncpa [#allocation6], 1
    %289 = vsyncpa [#allocation4], 1
    %s290 = scalar_lea.sflag [#allocation4], 1
    %291 = vsyncpa %s290, 1

</llo_original>
